<compile_context>
chip_gen: v7x
topology: tpu7x:2x2x1
jax: 0.10.0
libtpu: 0.0.40
codegen_flags: <defaults>
</compile_context>

<pallas_src>
import jax
import jax.numpy as jnp
from jax.experimental import pallas as pl
from jax.experimental.pallas import tpu as pltpu

_LANE = 128      # vreg lane width
_SUBLANE = 8     # f32 sublane count


def linear_kernel(w_ref, b_ref, x_ref, o_ref):
    # w_ref, b_ref: (1, 1) SMEM scalars; x_ref / o_ref: (br, 128) VMEM tiles.
    # Pure VPU elementwise FMA; weight/bias broadcast implicitly from scalars.
    w = w_ref[0, 0]
    b = b_ref[0, 0]
    o_ref[...] = x_ref[...] * w + b


def linear_forward(x, weight, bias, *, block_rows=2048):
    """PyTorch-style Linear(1, 1): x (N, 1) f32, weight (1, 1), bias (1,) -> (N, 1) f32."""
    n = x.shape[0]
    x_flat = x.reshape(-1).astype(jnp.float32)

    # Lane-dense slab: N scalar samples viewed as (rows, 128).  Only the ragged
    # tail (< 128 elements) is padded, and only when N is not 128-aligned.
    rows = pl.cdiv(n, _LANE)
    n_slab = rows * _LANE
    padded = n_slab != n
    if padded:
        x_flat = jnp.pad(x_flat, (0, n_slab - n))
    x2d = x_flat.reshape(rows, _LANE)

    # Block rows: multiple of 8 sublanes; capped at ceil(rows/2) when rows > 8 so
    # the grid always has >= 2 steps (keeps both v7x TensorCores busy).
    if rows <= _SUBLANE:
        br = rows                                   # full-extent block (valid as-is)
    else:
        target = min(block_rows, pl.cdiv(rows, 2))
        br = pl.cdiv(target, _SUBLANE) * _SUBLANE   # round up to a multiple of 8
    steps = pl.cdiv(rows, br)                       # partial final block allowed

    w2d = weight.reshape(1, 1).astype(jnp.float32)
    b2d = bias.reshape(1, 1).astype(jnp.float32)

    # Scoped-VMEM budget: in + out, double-buffered, plus headroom.
    block_bytes = br * _LANE * 4
    vmem_bytes = min(max(16 << 20, 4 * block_bytes + (4 << 20)), 64 << 20)

    out2d = pl.pallas_call(
        linear_kernel,
        out_shape=jax.ShapeDtypeStruct((rows, _LANE), jnp.float32),
        grid=(steps,),
        in_specs=[
            pl.BlockSpec(memory_space=pltpu.MemorySpace.SMEM),   # weight scalar
            pl.BlockSpec(memory_space=pltpu.MemorySpace.SMEM),   # bias scalar
            pl.BlockSpec((br, _LANE), lambda i: (i, 0)),         # x tile
        ],
        out_specs=pl.BlockSpec((br, _LANE), lambda i: (i, 0)),
        compiler_params=pltpu.CompilerParams(
            dimension_semantics=("parallel",),
            vmem_limit_bytes=vmem_bytes),
    )(w2d, b2d, x2d)

    # Restore the (N, 1) PyTorch layout; slice only if we padded.
    y_flat = out2d.reshape(-1)
    if padded:
        y_flat = y_flat[:n]
    return y_flat.reshape(n, 1)


if __name__ == "__main__":
    key = jax.random.PRNGKey(0)
    kx, kw, kb, kx2, kx3 = jax.random.split(key, 5)

    # Deterministic parameter init (mimics torch.nn.Linear(1, 1) uniform bound).
    weight = jax.random.uniform(kw, (1, 1), jnp.float32, minval=-1.0, maxval=1.0)
    bias = jax.random.uniform(kb, (1,), jnp.float32, minval=-1.0, maxval=1.0)

    # 1) Small batch of scalar inputs, shape (N, 1) just like the PyTorch usage.
    x = jax.random.normal(kx, (8, 1), jnp.float32)
    y = jax.block_until_ready(linear_forward(x, weight, bias))
    y_ref = x @ weight.T + bias
    assert y.shape == (8, 1) and y.dtype == jnp.float32
    assert jnp.allclose(y, y_ref, atol=1e-6, rtol=1e-6)

    # 2) Non-128-aligned batch: exercises the <128-element tail pad, the
    #    partial-block grid and the >=2-step split (rows=16 -> br=8, 2 steps).
    x2 = jax.random.normal(kx2, (2000, 1), jnp.float32)
    y2 = jax.block_until_ready(linear_forward(x2, weight, bias))
    y2_ref = x2 @ weight.T + bias
    assert y2.shape == (2000, 1)
    assert jnp.allclose(y2, y2_ref, atol=1e-6, rtol=1e-6)

    # 3) 128-aligned batch: no pad / no slice-back path, multi-step grid.
    x3 = jax.random.normal(kx3, (4096, 1), jnp.float32)
    y3 = jax.block_until_ready(linear_forward(x3, weight, bias))
    y3_ref = x3 @ weight.T + bias
    assert y3.shape == (4096, 1)
    assert jnp.allclose(y3, y3_ref, atol=1e-6, rtol=1e-6)

    print("KERNEL_OK")
</pallas_src>

<mosaic_0001>
module attributes {stable_mosaic.version = 11 : i64} {
  func.func @linear_kernel(%arg0: i32, %arg1: memref<1x1xf32, #tpu.memory_space<smem>>, %arg2: memref<1x1xf32, #tpu.memory_space<smem>>, %arg3: memref<1x128xf32, #tpu.memory_space<vmem>>, %arg4: memref<1x128xf32, #tpu.memory_space<vmem>>) attributes {dimension_semantics = [#tpu.dimension_semantics<parallel>], iteration_bounds = array<i64: 1>, scalar_prefetch = 0 : i64, scratch_operands = 0 : i64, tpu.core_type = #tpu.core_type<tc>, window_params = [{transform_indices = @transform_0, window_bounds = array<i64: 1, 1>}, {transform_indices = @transform_1, window_bounds = array<i64: 1, 1>}, {transform_indices = @transform_2, window_bounds = array<i64: 1, 128>}, {transform_indices = @transform_3, window_bounds = array<i64: 1, 128>}]} {
    %c0 = arith.constant 0 : index
    %c0_0 = arith.constant 0 : index
    %0 = memref.load %arg1[%c0, %c0_0] : memref<1x1xf32, #tpu.memory_space<smem>>
    %c0_1 = arith.constant 0 : index
    %c0_2 = arith.constant 0 : index
    %1 = memref.load %arg2[%c0_1, %c0_2] : memref<1x1xf32, #tpu.memory_space<smem>>
    %c0_3 = arith.constant 0 : index
    %c0_4 = arith.constant 0 : index
    %2 = vector.load %arg3[%c0_3, %c0_4] : memref<1x128xf32, #tpu.memory_space<vmem>>, vector<1x128xf32>
    %3 = vector.broadcast %0 : f32 to vector<1x128xf32>
    %4 = arith.mulf %2, %3 : vector<1x128xf32>
    %5 = vector.broadcast %1 : f32 to vector<1x128xf32>
    %6 = arith.addf %4, %5 : vector<1x128xf32>
    %c0_5 = arith.constant 0 : index
    %c0_6 = arith.constant 0 : index
    %7 = vector.load %arg4[%c0_5, %c0_6] : memref<1x128xf32, #tpu.memory_space<vmem>>, vector<1x128xf32>
    tpu.vector_store %arg4[%c0_5, %c0_6], %6 {strides = array<i32>} : memref<1x128xf32, #tpu.memory_space<vmem>>, vector<1x128xf32>,
    return
  }
  func.func @transform_0(%arg0: i32) -> (i32, i32) {
    %c0_i32 = arith.constant 0 : i32
    %c0_i32_0 = arith.constant 0 : i32
    %c0_i32_1 = arith.constant 0 : i32
    return %c0_i32, %c0_i32_0 : i32, i32
  }
  func.func @transform_1(%arg0: i32) -> (i32, i32) {
    %c0_i32 = arith.constant 0 : i32
    %c0_i32_0 = arith.constant 0 : i32
    %c0_i32_1 = arith.constant 0 : i32
    return %c0_i32, %c0_i32_0 : i32, i32
  }
  func.func @transform_2(%arg0: i32) -> (i32, i32) {
    %c0_i32 = arith.constant 0 : i32
    %c0_i32_0 = arith.constant 0 : i32
    return %arg0, %c0_i32 : i32, i32
  }
  func.func @transform_3(%arg0: i32) -> (i32, i32) {
    %c0_i32 = arith.constant 0 : i32
    %c0_i32_0 = arith.constant 0 : i32
    return %arg0, %c0_i32 : i32, i32
  }
}

</mosaic_0001>

<llo_original>
// kernel: tpu_custom_call.1
$region0: #{tpu_custom_call.1}
  #allocation0 [shape = 'u32[]', space=smem, size = 0x4, offset = 0x4, fixed_abs, tag = 'smem constant byte address 0x4 - core index']
  #allocation1 [shape = 'u32[144,128]{1,0:T(1,128)}', space=vmem, size = 0x12000, scoped, tag = 'internal scratch']
  #allocation2 [shape = 'f32[1,1]{1,0:T(1,128)S(6)}', space=smem, size = 0x200, scoped, tag = 'scoped memory for tpu_custom_call.1']
  #allocation3 [shape = 'f32[1,1]{1,0:T(1,128)S(6)}', space=smem, size = 0x200, scoped, tag = 'scoped memory for tpu_custom_call.1']
  %s0 = inlined_call_operand.<no memory space> [shape: f32[1,1], index: 0, kind: input, shape index: {}]
  %s1 = inlined_call_operand.<no memory space> [shape: f32[1,1], index: 1, kind: input, shape index: {}]
  %s2 = inlined_call_operand.vmem [shape: f32[1,128], index: 2, kind: input, shape index: {}]
  %s3 = inlined_call_operand.hbm [shape: f32[1,128], index: 3, kind: output, shape index: {}]
  %s4 = sld [smem:[#allocation0]]
  $region22: #{tpu_custom_call.1} parent=0
    _
  %s6 = ssub.s32 1, %s4
  %s7 = scalar_select 0, %s6, %s4
  %8 = sst [smem:[#allocation2]] %s0
  %9 = sst [smem:[#allocation3]] %s1
  $region1: #{tpu_custom_call.1} parent=0
    #allocation4 [shape = 'u8[512]{0}', space=vmem, size = 0x400, scoped, tag = 'output window, operand 0, single buffered']
    #allocation5 [shape = 's32[1]{0}', space=sflag, size = 0x4, scoped, tag = 'scoped memory for tpu_custom_call.1']
    %10 = vsyncpa [#allocation5], 0
    // Predicated region
    $region2: #{tpu_custom_call.1} parent=1 // pred_check
      _
    $region3: #{tpu_custom_call.1} parent=1 // pred_check_branch
      %12 = sbr.rel (0) target = $region5
    $region4: #{tpu_custom_call.1} parent=1 // pred_region
      _
    $region5: #{tpu_custom_call.1} parent=1 // pred_fallthru
      _
    // Predicated region
    $region6: #{tpu_custom_call.1} parent=1 // pred_check
      _
    $region7: #{tpu_custom_call.1} parent=1 // pred_check_branch
      %14 = sbr.rel (0) target = $region9
    $region8: #{tpu_custom_call.1} parent=1 // pred_region
      _
    $region9: #{tpu_custom_call.1} parent=1 // pred_fallthru
      _
    // Predicated region
    $region10: #{tpu_custom_call.1} parent=1 // pred_check
      _
    $region11: #{tpu_custom_call.1} parent=1 // pred_check_branch
      %16 = sbr.rel (0) target = $region13
    $region12: #{tpu_custom_call.1} parent=1 // pred_region
      _
    $region13: #{tpu_custom_call.1} parent=1 // pred_fallthru
      _
    %s17 = sld [smem:[#allocation2]]
    %s18 = sld [smem:[#allocation3]]
    %v19 = vld [vmem:[%s2] sm:$0x1]
    %v20 = vstv %s17
    %v21 = vmul.f32 %v19, %v20
    %v22 = vstv %s18
    %v23 = vadd.f32 %v21, %v22
    %24 = vst [vmem:[#allocation4] sm:$0x1] %v23
    // Predicated region
    $region14: #{tpu_custom_call.1} parent=1 // pred_check
      _
    $region15: #{tpu_custom_call.1} parent=1 // pred_check_branch
      %26 = sbr.rel (0) target = $region17
    $region16: #{tpu_custom_call.1} parent=1 // pred_region
      %s28 = ssub.s32 16, 16
      %29 = vsyncadd [#allocation5], %s28
      %s31 = sshll.u32 [#allocation4], 4
      %s32 = int_to_ptr.vmem [resolvable:$true] %s31
      %34 = dma.vmem_to_hbm [thread:$0]  %s32, 16, %s3, [#allocation5]
    $region17: #{tpu_custom_call.1} parent=1 // pred_fallthru
      _
    // Predicated region
    $region18: #{tpu_custom_call.1} parent=1 // pred_check
      _
    $region19: #{tpu_custom_call.1} parent=1 // pred_check_branch
      %36 = sbr.rel (0) target = $region21
    $region20: #{tpu_custom_call.1} parent=1 // pred_region
      %37 = dma.done [#allocation5], 16
    $region21: #{tpu_custom_call.1} parent=1 // pred_fallthru
      _
    %38 = vsyncpa [#allocation5], 1

</llo_original>
